<compile_context>
chip_gen: v6e
topology: v6e:2x2x1
jax: 0.10.0
libtpu: 0.0.40
codegen_flags: <defaults>
</compile_context>

<pallas_src>
import jax
import jax.numpy as jnp
from jax import lax
from jax.experimental import pallas as pl
from jax.experimental.pallas import tpu as pltpu

# ---------------- config ----------------
VOCAB = 50
EMB = 32
HID = 32
NUM_CLASS = 4
PAD_INDEX = 0
OUT_PAD = 128           # lane-dense FC output width (sliced to NUM_CLASS outside)
B = 4
T = 8


# ---------------- Pallas kernel ----------------
def _bilstm_fc_kernel(len_ref, xg_ref, whh_ref, wfc_ref, bfc_ref, out_ref):
    # len_ref  (Bp, 1)      i32  : sequence lengths (0 for padded batch rows).
    # xg_ref   (T, Bp, 8H)  bf16 : precomputed gate inputs (embedding @ W_ih + b
    #                              folded). Column blocks (each H wide):
    #                              [i_f, i_b, f_f, f_b, o_f, o_b, g_f, g_b];
    #                              backward half already time-reversed; g blocks
    #                              pre-scaled by 2 (tanh-via-sigmoid identity).
    # whh_ref  (2H, 8H)     bf16 : block-diagonal recurrent weights matching the
    #                              layout above ([h_fwd | h_bwd] @ whh -> gates);
    #                              g columns pre-scaled by 2.
    # wfc_ref  (2H, OUT_PAD) f32 : fc weights, rows [:H] multiply the FORWARD
    #                              final hidden, rows [H:] the BACKWARD one
    #                              (permuted = torch.cat([hidden[-1], hidden[-2]])),
    #                              zero-padded past NUM_CLASS columns.
    # bfc_ref  (1, OUT_PAD)  f32
    # out_ref  (Bp, OUT_PAD) f32 : logits in columns [:NUM_CLASS]
    Tn, Bn, _ = xg_ref.shape
    H2 = whh_ref.shape[0]                     # 2*H  (fwd|bwd concatenated state)
    H = H2 // 2

    whh = whh_ref[...]                        # hoisted: loaded once (bf16)
    lens = jnp.broadcast_to(len_ref[...], (Bn, H2))                # (Bp, 2H) i32
    is_fwd = lax.broadcasted_iota(jnp.int32, (Bn, H2), 1) < H      # fwd/bwd halves

    h = jnp.zeros((Bn, H2), jnp.float32)      # [h_fwd | h_bwd]
    c = jnp.zeros((Bn, H2), jnp.float32)

    # Fully-unrolled fused forward+backward recurrence (T is compile-time const);
    # per step: one bf16 (Bp,2H)x(2H,8H) MXU matmul + ONE sigmoid + one tanh.
    for t in range(Tn):
        gates = xg_ref[t].astype(jnp.float32) + jnp.dot(
            h.astype(jnp.bfloat16), whh, preferred_element_type=jnp.float32)
        sig = jax.nn.sigmoid(gates)                   # single EUP push, (Bp, 8H)
        i_g = sig[:, 0:H2]
        f_g = sig[:, H2:2 * H2]
        o_g = sig[:, 2 * H2:3 * H2]
        g_g = 2.0 * sig[:, 3 * H2:] - 1.0             # tanh(z) = 2*sigmoid(2z)-1
        c_new = f_g * c + i_g * g_g
        h_new = o_g * jnp.tanh(c_new)
        # packed-seq masking: fwd valid iff t < len, bwd valid iff (T-1-t) < len.
        valid = lens > jnp.where(is_fwd, t, Tn - 1 - t)
        h = jnp.where(valid, h_new, h)
        c = jnp.where(valid, c_new, c)

    # prediction = fc(concat([h_bwd_final, h_fwd_final])) — wfc already permuted.
    out_ref[...] = (jnp.dot(h, wfc_ref[...], preferred_element_type=jnp.float32)
                    + bfc_ref[...])


# ---------------- wrapper ----------------
def lstm_classifier_forward(ids, lengths, kp):
    """ids (B, T) int32, lengths (B,) int32 (all >= 1), kp = prepare_kernel_params(...)."""
    bsz, seq = ids.shape
    hid = kp["hid"]

    # Pad batch to a multiple of 8 (f32 sublane tile); padded rows get length 0.
    bp = max(8, ((bsz + 7) // 8) * 8)
    pad = bp - bsz
    ids_p = jnp.pad(ids, ((0, pad), (0, 0)), constant_values=PAD_INDEX)
    len_p = jnp.pad(lengths.astype(jnp.int32), (0, pad)).reshape(bp, 1)

    # Gather precomputed gate inputs (embedding + input projection + bias folded);
    # dropout is identity at inference. Backward direction gathers reversed time.
    gf = jnp.take(kp["xtab_f"], ids_p, axis=0)             # (Bp, T, 4H)  [i,f,o,g]
    gb = jnp.take(kp["xtab_b"], ids_p[:, ::-1], axis=0)    # (Bp, T, 4H)  time-reversed
    gf = gf.reshape(bp, seq, 4, hid)
    gb = gb.reshape(bp, seq, 4, hid)
    # interleave by direction -> blocks [i_f, i_b, f_f, f_b, o_f, o_b, g_f, g_b]
    xg = jnp.stack([gf, gb], axis=3).reshape(bp, seq, 8 * hid)
    xg = jnp.transpose(xg, (1, 0, 2)).astype(jnp.bfloat16)  # (T, Bp, 8H) time-major

    vmem = pl.BlockSpec(memory_space=pltpu.MemorySpace.VMEM)
    out = pl.pallas_call(
        _bilstm_fc_kernel,
        out_shape=jax.ShapeDtypeStruct((bp, OUT_PAD), jnp.float32),
        in_specs=[vmem] * 5,
        out_specs=vmem,
    )(len_p, xg, kp["whh_bd"], kp["wfc_k"], kp["bfc"])
    return out[:bsz, :NUM_CLASS]


# ---------------- deterministic parameter init (PyTorch layout) ----------------
def init_params(key):
    ks = jax.random.split(key, 8)
    # xavier_normal_ for embedding (V, E)
    std_emb = (2.0 / (VOCAB + EMB)) ** 0.5
    embedding = std_emb * jax.random.normal(ks[0], (VOCAB, EMB), jnp.float32)

    ortho = jax.nn.initializers.orthogonal()
    # PyTorch stores weight_ih_l0 as (4H, E), weight_hh_l0 as (4H, H),
    # gate row order [i, f, g, o]; all biases are zero-initialized.
    w_ih_f = ortho(ks[1], (4 * HID, EMB), jnp.float32)
    w_hh_f = ortho(ks[2], (4 * HID, HID), jnp.float32)
    w_ih_b = ortho(ks[3], (4 * HID, EMB), jnp.float32)
    w_hh_b = ortho(ks[4], (4 * HID, HID), jnp.float32)
    zeros4h = jnp.zeros((4 * HID,), jnp.float32)

    # xavier_normal_ for fc (C, 2H), zero bias
    std_fc = (2.0 / (NUM_CLASS + 2 * HID)) ** 0.5
    w_fc = std_fc * jax.random.normal(ks[5], (NUM_CLASS, 2 * HID), jnp.float32)
    b_fc = jnp.zeros((NUM_CLASS,), jnp.float32)

    return dict(embedding=embedding,
                w_ih_f=w_ih_f, w_hh_f=w_hh_f, b_ih_f=zeros4h, b_hh_f=zeros4h,
                w_ih_b=w_ih_b, w_hh_b=w_hh_b, b_ih_b=zeros4h, b_hh_b=zeros4h,
                w_fc=w_fc, b_fc=b_fc)


# ---------------- host-side folding / reordering for the kernel ----------------
def prepare_kernel_params(p):
    emb = p["embedding"]                                   # (V, E)

    def reorder_ifog(x, axis):
        # PyTorch gate order [i, f, g, o] -> kernel order [i, f, o, g]
        i, f, g, o = jnp.split(x, 4, axis=axis)
        return jnp.concatenate([i, f, o, g], axis=axis)

    # tanh(z) = 2*sigmoid(2z) - 1: fold the x2 into the g-gate inputs (tables and
    # whh columns) so the kernel does a single sigmoid over the whole gate slab.
    g_scale_4h = jnp.concatenate(
        [jnp.ones((3 * HID,), jnp.float32), jnp.full((HID,), 2.0, jnp.float32)])

    def gate_table(w_ih, bias):                            # w_ih (4H,E), bias (4H,)
        w = reorder_ifog(w_ih, 0)                          # (4H, E)
        b = reorder_ifog(bias, 0)                          # (4H,)
        tab = emb @ w.T + b[None, :]                       # (V, 4H): emb@W_ih + b folded
        return tab * g_scale_4h[None, :]

    xtab_f = gate_table(p["w_ih_f"], p["b_ih_f"] + p["b_hh_f"])
    xtab_b = gate_table(p["w_ih_b"], p["b_ih_b"] + p["b_hh_b"])

    def split_hh(w_hh):                                    # (4H, H) PT -> per-gate (H, H), h @ W form
        i, f, g, o = jnp.split(w_hh, 4, axis=0)
        return i.T, f.T, o.T, g.T
    fi, ff, fo, fg = split_hh(p["w_hh_f"])
    bi, bf, bo, bg = split_hh(p["w_hh_b"])
    z = jnp.zeros((HID, HID), jnp.float32)
    # rows [:H] driven by h_fwd, rows [H:] by h_bwd; columns match xg block layout
    whh_bd = jnp.concatenate([
        jnp.concatenate([fi, z, ff, z, fo, z, fg, z], axis=1),
        jnp.concatenate([z, bi, z, bf, z, bo, z, bg], axis=1),
    ], axis=0)                                             # (2H, 8H)
    col_scale = jnp.concatenate(
        [jnp.ones((6 * HID,), jnp.float32), jnp.full((2 * HID,), 2.0, jnp.float32)])
    whh_bd = (whh_bd * col_scale[None, :]).astype(jnp.bfloat16)

    # Reference does fc(cat([hidden[-1], hidden[-2]])) = fc(cat([h_bwd, h_fwd])):
    # fc.weight.T rows [:H] multiply h_bwd, rows [H:] multiply h_fwd. The kernel's
    # state is [h_fwd | h_bwd], so swap the row halves. Pad columns to OUT_PAD.
    wfc_t = p["w_fc"].T                                    # (2H, C)
    wfc_k = jnp.concatenate([wfc_t[HID:], wfc_t[:HID]], axis=0)      # (2H, C)
    wfc_k = jnp.pad(wfc_k, ((0, 0), (0, OUT_PAD - NUM_CLASS)))       # (2H, OUT_PAD)
    bfc = jnp.pad(p["b_fc"], (0, OUT_PAD - NUM_CLASS)).reshape(1, -1)

    return dict(xtab_f=xtab_f, xtab_b=xtab_b, whh_bd=whh_bd,
                wfc_k=wfc_k, bfc=bfc, hid=HID)


# ---------------- pure-JAX f32 reference (for correctness validation) ----------------
def _reference_forward(p, ids, lengths):
    emb = p["embedding"][ids]                              # (B, T, E)

    def cell(x, h, c, w_ih, w_hh, b):
        zg = x @ w_ih.T + h @ w_hh.T + b
        i, f, g, o = jnp.split(zg, 4)
        i, f, o = jax.nn.sigmoid(i), jax.nn.sigmoid(f), jax.nn.sigmoid(o)
        g = jnp.tanh(g)
        c = f * c + i * g
        return o * jnp.tanh(c), c

    outs = []
    for b in range(ids.shape[0]):
        L = int(lengths[b])
        hf = cf = jnp.zeros((HID,), jnp.float32)
        for t in range(L):
            hf, cf = cell(emb[b, t], hf, cf, p["w_ih_f"], p["w_hh_f"],
                          p["b_ih_f"] + p["b_hh_f"])
        hb = cb = jnp.zeros((HID,), jnp.float32)
        for t in range(L - 1, -1, -1):
            hb, cb = cell(emb[b, t], hb, cb, p["w_ih_b"], p["w_hh_b"],
                          p["b_ih_b"] + p["b_hh_b"])
        hcat = jnp.concatenate([hb, hf])                   # cat([hidden[-1], hidden[-2]])
        outs.append(hcat @ p["w_fc"].T + p["b_fc"])
    return jnp.stack(outs)


if __name__ == "__main__":
    key = jax.random.PRNGKey(0)
    pkey, ikey = jax.random.split(key)
    params = init_params(pkey)
    kparams = prepare_kernel_params(params)

    # deterministic token ids in [1, VOCAB), padded with PAD_INDEX past length
    ids = jax.random.randint(ikey, (B, T), 1, VOCAB, dtype=jnp.int32)
    lengths = jnp.array([8, 5, 3, 6], dtype=jnp.int32)     # all >= 1 (packed-seq requirement)
    time_idx = jnp.arange(T, dtype=jnp.int32)[None, :]
    ids = jnp.where(time_idx < lengths[:, None], ids, PAD_INDEX)

    logits = lstm_classifier_forward(ids, lengths, kparams)
    jax.block_until_ready(logits)
    assert logits.shape == (B, NUM_CLASS)

    # validate against the f32 reference (kernel uses bf16 MXU operands -> loose tol)
    ref = _reference_forward(params, ids, lengths)
    assert float(jnp.max(jnp.abs(logits - ref))) < 5e-2

    print("KERNEL_OK")
</pallas_src>

<mosaic_0001>
module attributes {stable_mosaic.version = 11 : i64} {
  func.func @_bilstm_fc_kernel(%arg0: memref<8x1xi32, #tpu.memory_space<vmem>>, %arg1: memref<8x8x256xbf16, #tpu.memory_space<vmem>>, %arg2: memref<64x256xbf16, #tpu.memory_space<vmem>>, %arg3: memref<64x128xf32, #tpu.memory_space<vmem>>, %arg4: memref<1x128xf32, #tpu.memory_space<vmem>>, %arg5: memref<8x128xf32, #tpu.memory_space<vmem>>) attributes {dimension_semantics = [], scalar_prefetch = 0 : i64, scratch_operands = 0 : i64, tpu.core_type = #tpu.core_type<tc>} {
    %c0 = arith.constant 0 : index
    %c0_0 = arith.constant 0 : index
    %0 = vector.load %arg2[%c0, %c0_0] : memref<64x256xbf16, #tpu.memory_space<vmem>>, vector<64x256xbf16>
    %c0_1 = arith.constant 0 : index
    %c0_2 = arith.constant 0 : index
    %1 = vector.load %arg0[%c0_1, %c0_2] : memref<8x1xi32, #tpu.memory_space<vmem>>, vector<8x1xi32>
    %2 = vector.shape_cast %1 : vector<8x1xi32> to vector<8x1xi32>
    %3 = vector.broadcast %2 : vector<8x1xi32> to vector<8x64xi32>
    %4 = tpu.iota {dimensions = array<i32: 1>} : vector<8x64xi32>
    %c32_i32 = arith.constant 32 : i32
    %5 = vector.broadcast %c32_i32 : i32 to vector<8x64xi32>
    %6 = arith.cmpi slt, %4, %5 : vector<8x64xi32>
    %cst = arith.constant 0.000000e+00 : f32
    %7 = vector.broadcast %cst : f32 to vector<8x64xf32>
    %cst_3 = arith.constant 0.000000e+00 : f32
    %8 = vector.broadcast %cst_3 : f32 to vector<8x64xf32>
    %c0_4 = arith.constant 0 : index
    %c0_5 = arith.constant 0 : index
    %c0_6 = arith.constant 0 : index
    %9 = vector.load %arg1[%c0_4, %c0_5, %c0_6] : memref<8x8x256xbf16, #tpu.memory_space<vmem>>, vector<1x8x256xbf16>
    %10 = vector.shape_cast %9 : vector<1x8x256xbf16> to vector<8x256xbf16>
    %11 = arith.extf %10 : vector<8x256xbf16> to vector<8x256xf32>
    %12 = arith.truncf %7 : vector<8x64xf32> to vector<8x64xbf16>
    %cst_7 = arith.constant dense<0.000000e+00> : vector<8x256xf32>
    %13 = tpu.matmul %12, %0, %cst_7 {dimension_numbers = #tpu.dot_dimension_numbers<[1], [0], [0], [1], [0, 0, 1, 1], [], []>} : vector<8x64xbf16>, vector<64x256xbf16>, vector<8x256xf32> -> vector<8x256xf32>
    %14 = arith.addf %11, %13 : vector<8x256xf32>
    %15 = arith.negf %14 : vector<8x256xf32>
    %16 = math.exp %15 : vector<8x256xf32>
    %cst_8 = arith.constant 1.000000e+00 : f32
    %17 = vector.broadcast %cst_8 : f32 to vector<8x256xf32>
    %18 = arith.addf %17, %16 : vector<8x256xf32>
    %19 = arith.divf %17, %18 : vector<8x256xf32>
    %20 = vector.extract_strided_slice %19 {offsets = [0, 0], sizes = [8, 64], strides = [1, 1]} : vector<8x256xf32> to vector<8x64xf32>
    %21 = vector.extract_strided_slice %19 {offsets = [0, 64], sizes = [8, 64], strides = [1, 1]} : vector<8x256xf32> to vector<8x64xf32>
    %22 = vector.extract_strided_slice %19 {offsets = [0, 128], sizes = [8, 64], strides = [1, 1]} : vector<8x256xf32> to vector<8x64xf32>
    %23 = vector.extract_strided_slice %19 {offsets = [0, 192], sizes = [8, 64], strides = [1, 1]} : vector<8x256xf32> to vector<8x64xf32>
    %cst_9 = arith.constant 2.000000e+00 : f32
    %24 = vector.broadcast %cst_9 : f32 to vector<8x64xf32>
    %25 = arith.mulf %24, %23 : vector<8x64xf32>
    %cst_10 = arith.constant 1.000000e+00 : f32
    %26 = vector.broadcast %cst_10 : f32 to vector<8x64xf32>
    %27 = arith.subf %25, %26 : vector<8x64xf32>
    %28 = arith.mulf %21, %8 : vector<8x64xf32>
    %29 = arith.mulf %20, %27 : vector<8x64xf32>
    %30 = arith.addf %28, %29 : vector<8x64xf32>
    %31 = math.tanh %30 : vector<8x64xf32>
    %32 = arith.mulf %22, %31 : vector<8x64xf32>
    %c0_i32 = arith.constant 0 : i32
    %c7_i32 = arith.constant 7 : i32
    %33 = vector.broadcast %c0_i32 : i32 to vector<8x64xi32>
    %34 = vector.broadcast %c7_i32 : i32 to vector<8x64xi32>
    %35 = arith.select %6, %33, %34 : vector<8x64xi1>, vector<8x64xi32>
    %36 = arith.cmpi sgt, %3, %35 : vector<8x64xi32>
    %37 = arith.select %36, %32, %7 : vector<8x64xi1>, vector<8x64xf32>
    %38 = arith.select %36, %30, %8 : vector<8x64xi1>, vector<8x64xf32>
    %c1 = arith.constant 1 : index
    %c0_11 = arith.constant 0 : index
    %c0_12 = arith.constant 0 : index
    %39 = vector.load %arg1[%c1, %c0_11, %c0_12] : memref<8x8x256xbf16, #tpu.memory_space<vmem>>, vector<1x8x256xbf16>
    %40 = vector.shape_cast %39 : vector<1x8x256xbf16> to vector<8x256xbf16>
    %41 = arith.extf %40 : vector<8x256xbf16> to vector<8x256xf32>
    %42 = arith.truncf %37 : vector<8x64xf32> to vector<8x64xbf16>
    %cst_13 = arith.constant dense<0.000000e+00> : vector<8x256xf32>
    %43 = tpu.matmul %42, %0, %cst_13 {dimension_numbers = #tpu.dot_dimension_numbers<[1], [0], [0], [1], [0, 0, 1, 1], [], []>} : vector<8x64xbf16>, vector<64x256xbf16>, vector<8x256xf32> -> vector<8x256xf32>
    %44 = arith.addf %41, %43 : vector<8x256xf32>
    %45 = arith.negf %44 : vector<8x256xf32>
    %46 = math.exp %45 : vector<8x256xf32>
    %cst_14 = arith.constant 1.000000e+00 : f32
    %47 = vector.broadcast %cst_14 : f32 to vector<8x256xf32>
    %48 = arith.addf %47, %46 : vector<8x256xf32>
    %49 = arith.divf %47, %48 : vector<8x256xf32>
    %50 = vector.extract_strided_slice %49 {offsets = [0, 0], sizes = [8, 64], strides = [1, 1]} : vector<8x256xf32> to vector<8x64xf32>
    %51 = vector.extract_strided_slice %49 {offsets = [0, 64], sizes = [8, 64], strides = [1, 1]} : vector<8x256xf32> to vector<8x64xf32>
    %52 = vector.extract_strided_slice %49 {offsets = [0, 128], sizes = [8, 64], strides = [1, 1]} : vector<8x256xf32> to vector<8x64xf32>
    %53 = vector.extract_strided_slice %49 {offsets = [0, 192], sizes = [8, 64], strides = [1, 1]} : vector<8x256xf32> to vector<8x64xf32>
    %cst_15 = arith.constant 2.000000e+00 : f32
    %54 = vector.broadcast %cst_15 : f32 to vector<8x64xf32>
    %55 = arith.mulf %54, %53 : vector<8x64xf32>
    %cst_16 = arith.constant 1.000000e+00 : f32
    %56 = vector.broadcast %cst_16 : f32 to vector<8x64xf32>
    %57 = arith.subf %55, %56 : vector<8x64xf32>
    %58 = arith.mulf %51, %38 : vector<8x64xf32>
    %59 = arith.mulf %50, %57 : vector<8x64xf32>
    %60 = arith.addf %58, %59 : vector<8x64xf32>
    %61 = math.tanh %60 : vector<8x64xf32>
    %62 = arith.mulf %52, %61 : vector<8x64xf32>
    %c1_i32 = arith.constant 1 : i32
    %c6_i32 = arith.constant 6 : i32
    %63 = vector.broadcast %c1_i32 : i32 to vector<8x64xi32>
    %64 = vector.broadcast %c6_i32 : i32 to vector<8x64xi32>
    %65 = arith.select %6, %63, %64 : vector<8x64xi1>, vector<8x64xi32>
    %66 = arith.cmpi sgt, %3, %65 : vector<8x64xi32>
    %67 = arith.select %66, %62, %37 : vector<8x64xi1>, vector<8x64xf32>
    %68 = arith.select %66, %60, %38 : vector<8x64xi1>, vector<8x64xf32>
    %c2 = arith.constant 2 : index
    %c0_17 = arith.constant 0 : index
    %c0_18 = arith.constant 0 : index
    %69 = vector.load %arg1[%c2, %c0_17, %c0_18] : memref<8x8x256xbf16, #tpu.memory_space<vmem>>, vector<1x8x256xbf16>
    %70 = vector.shape_cast %69 : vector<1x8x256xbf16> to vector<8x256xbf16>
    %71 = arith.extf %70 : vector<8x256xbf16> to vector<8x256xf32>
    %72 = arith.truncf %67 : vector<8x64xf32> to vector<8x64xbf16>
    %cst_19 = arith.constant dense<0.000000e+00> : vector<8x256xf32>
    %73 = tpu.matmul %72, %0, %cst_19 {dimension_numbers = #tpu.dot_dimension_numbers<[1], [0], [0], [1], [0, 0, 1, 1], [], []>} : vector<8x64xbf16>, vector<64x256xbf16>, vector<8x256xf32> -> vector<8x256xf32>
    %74 = arith.addf %71, %73 : vector<8x256xf32>
    %75 = arith.negf %74 : vector<8x256xf32>
    %76 = math.exp %75 : vector<8x256xf32>
    %cst_20 = arith.constant 1.000000e+00 : f32
    %77 = vector.broadcast %cst_20 : f32 to vector<8x256xf32>
    %78 = arith.addf %77, %76 : vector<8x256xf32>
    %79 = arith.divf %77, %78 : vector<8x256xf32>
    %80 = vector.extract_strided_slice %79 {offsets = [0, 0], sizes = [8, 64], strides = [1, 1]} : vector<8x256xf32> to vector<8x64xf32>
    %81 = vector.extract_strided_slice %79 {offsets = [0, 64], sizes = [8, 64], strides = [1, 1]} : vector<8x256xf32> to vector<8x64xf32>
    %82 = vector.extract_strided_slice %79 {offsets = [0, 128], sizes = [8, 64], strides = [1, 1]} : vector<8x256xf32> to vector<8x64xf32>
    %83 = vector.extract_strided_slice %79 {offsets = [0, 192], sizes = [8, 64], strides = [1, 1]} : vector<8x256xf32> to vector<8x64xf32>
    %cst_21 = arith.constant 2.000000e+00 : f32
    %84 = vector.broadcast %cst_21 : f32 to vector<8x64xf32>
    %85 = arith.mulf %84, %83 : vector<8x64xf32>
    %cst_22 = arith.constant 1.000000e+00 : f32
    %86 = vector.broadcast %cst_22 : f32 to vector<8x64xf32>
    %87 = arith.subf %85, %86 : vector<8x64xf32>
    %88 = arith.mulf %81, %68 : vector<8x64xf32>
    %89 = arith.mulf %80, %87 : vector<8x64xf32>
    %90 = arith.addf %88, %89 : vector<8x64xf32>
    %91 = math.tanh %90 : vector<8x64xf32>
    %92 = arith.mulf %82, %91 : vector<8x64xf32>
    %c2_i32 = arith.constant 2 : i32
    %c5_i32 = arith.constant 5 : i32
    %93 = vector.broadcast %c2_i32 : i32 to vector<8x64xi32>
    %94 = vector.broadcast %c5_i32 : i32 to vector<8x64xi32>
    %95 = arith.select %6, %93, %94 : vector<8x64xi1>, vector<8x64xi32>
    %96 = arith.cmpi sgt, %3, %95 : vector<8x64xi32>
    %97 = arith.select %96, %92, %67 : vector<8x64xi1>, vector<8x64xf32>
    %98 = arith.select %96, %90, %68 : vector<8x64xi1>, vector<8x64xf32>
    %c3 = arith.constant 3 : index
    %c0_23 = arith.constant 0 : index
    %c0_24 = arith.constant 0 : index
    %99 = vector.load %arg1[%c3, %c0_23, %c0_24] : memref<8x8x256xbf16, #tpu.memory_space<vmem>>, vector<1x8x256xbf16>
    %100 = vector.shape_cast %99 : vector<1x8x256xbf16> to vector<8x256xbf16>
    %101 = arith.extf %100 : vector<8x256xbf16> to vector<8x256xf32>
    %102 = arith.truncf %97 : vector<8x64xf32> to vector<8x64xbf16>
    %cst_25 = arith.constant dense<0.000000e+00> : vector<8x256xf32>
    %103 = tpu.matmul %102, %0, %cst_25 {dimension_numbers = #tpu.dot_dimension_numbers<[1], [0], [0], [1], [0, 0, 1, 1], [], []>} : vector<8x64xbf16>, vector<64x256xbf16>, vector<8x256xf32> -> vector<8x256xf32>
    %104 = arith.addf %101, %103 : vector<8x256xf32>
    %105 = arith.negf %104 : vector<8x256xf32>
    %106 = math.exp %105 : vector<8x256xf32>
    %cst_26 = arith.constant 1.000000e+00 : f32
    %107 = vector.broadcast %cst_26 : f32 to vector<8x256xf32>
    %108 = arith.addf %107, %106 : vector<8x256xf32>
    %109 = arith.divf %107, %108 : vector<8x256xf32>
    %110 = vector.extract_strided_slice %109 {offsets = [0, 0], sizes = [8, 64], strides = [1, 1]} : vector<8x256xf32> to vector<8x64xf32>
    %111 = vector.extract_strided_slice %109 {offsets = [0, 64], sizes = [8, 64], strides = [1, 1]} : vector<8x256xf32> to vector<8x64xf32>
    %112 = vector.extract_strided_slice %109 {offsets = [0, 128], sizes = [8, 64], strides = [1, 1]} : vector<8x256xf32> to vector<8x64xf32>
    %113 = vector.extract_strided_slice %109 {offsets = [0, 192], sizes = [8, 64], strides = [1, 1]} : vector<8x256xf32> to vector<8x64xf32>
    %cst_27 = arith.constant 2.000000e+00 : f32
    %114 = vector.broadcast %cst_27 : f32 to vector<8x64xf32>
    %115 = arith.mulf %114, %113 : vector<8x64xf32>
    %cst_28 = arith.constant 1.000000e+00 : f32
    %116 = vector.broadcast %cst_28 : f32 to vector<8x64xf32>
    %117 = arith.subf %115, %116 : vector<8x64xf32>
    %118 = arith.mulf %111, %98 : vector<8x64xf32>
    %119 = arith.mulf %110, %117 : vector<8x64xf32>
    %120 = arith.addf %118, %119 : vector<8x64xf32>
    %121 = math.tanh %120 : vector<8x64xf32>
    %122 = arith.mulf %112, %121 : vector<8x64xf32>
    %c3_i32 = arith.constant 3 : i32
    %c4_i32 = arith.constant 4 : i32
    %123 = vector.broadcast %c3_i32 : i32 to vector<8x64xi32>
    %124 = vector.broadcast %c4_i32 : i32 to vector<8x64xi32>
    %125 = arith.select %6, %123, %124 : vector<8x64xi1>, vector<8x64xi32>
    %126 = arith.cmpi sgt, %3, %125 : vector<8x64xi32>
    %127 = arith.select %126, %122, %97 : vector<8x64xi1>, vector<8x64xf32>
    %128 = arith.select %126, %120, %98 : vector<8x64xi1>, vector<8x64xf32>
    %c4 = arith.constant 4 : index
    %c0_29 = arith.constant 0 : index
    %c0_30 = arith.constant 0 : index
    %129 = vector.load %arg1[%c4, %c0_29, %c0_30] : memref<8x8x256xbf16, #tpu.memory_space<vmem>>, vector<1x8x256xbf16>
    %130 = vector.shape_cast %129 : vector<1x8x256xbf16> to vector<8x256xbf16>
    %131 = arith.extf %130 : vector<8x256xbf16> to vector<8x256xf32>
    %132 = arith.truncf %127 : vector<8x64xf32> to vector<8x64xbf16>
    %cst_31 = arith.constant dense<0.000000e+00> : vector<8x256xf32>
    %133 = tpu.matmul %132, %0, %cst_31 {dimension_numbers = #tpu.dot_dimension_numbers<[1], [0], [0], [1], [0, 0, 1, 1], [], []>} : vector<8x64xbf16>, vector<64x256xbf16>, vector<8x256xf32> -> vector<8x256xf32>
    %134 = arith.addf %131, %133 : vector<8x256xf32>
    %135 = arith.negf %134 : vector<8x256xf32>
    %136 = math.exp %135 : vector<8x256xf32>
    %cst_32 = arith.constant 1.000000e+00 : f32
    %137 = vector.broadcast %cst_32 : f32 to vector<8x256xf32>
    %138 = arith.addf %137, %136 : vector<8x256xf32>
    %139 = arith.divf %137, %138 : vector<8x256xf32>
    %140 = vector.extract_strided_slice %139 {offsets = [0, 0], sizes = [8, 64], strides = [1, 1]} : vector<8x256xf32> to vector<8x64xf32>
    %141 = vector.extract_strided_slice %139 {offsets = [0, 64], sizes = [8, 64], strides = [1, 1]} : vector<8x256xf32> to vector<8x64xf32>
    %142 = vector.extract_strided_slice %139 {offsets = [0, 128], sizes = [8, 64], strides = [1, 1]} : vector<8x256xf32> to vector<8x64xf32>
    %143 = vector.extract_strided_slice %139 {offsets = [0, 192], sizes = [8, 64], strides = [1, 1]} : vector<8x256xf32> to vector<8x64xf32>
    %cst_33 = arith.constant 2.000000e+00 : f32
    %144 = vector.broadcast %cst_33 : f32 to vector<8x64xf32>
    %145 = arith.mulf %144, %143 : vector<8x64xf32>
    %cst_34 = arith.constant 1.000000e+00 : f32
    %146 = vector.broadcast %cst_34 : f32 to vector<8x64xf32>
    %147 = arith.subf %145, %146 : vector<8x64xf32>
    %148 = arith.mulf %141, %128 : vector<8x64xf32>
    %149 = arith.mulf %140, %147 : vector<8x64xf32>
    %150 = arith.addf %148, %149 : vector<8x64xf32>
    %151 = math.tanh %150 : vector<8x64xf32>
    %152 = arith.mulf %142, %151 : vector<8x64xf32>
    %c4_i32_35 = arith.constant 4 : i32
    %c3_i32_36 = arith.constant 3 : i32
    %153 = vector.broadcast %c4_i32_35 : i32 to vector<8x64xi32>
    %154 = vector.broadcast %c3_i32_36 : i32 to vector<8x64xi32>
    %155 = arith.select %6, %153, %154 : vector<8x64xi1>, vector<8x64xi32>
    %156 = arith.cmpi sgt, %3, %155 : vector<8x64xi32>
    %157 = arith.select %156, %152, %127 : vector<8x64xi1>, vector<8x64xf32>
    %158 = arith.select %156, %150, %128 : vector<8x64xi1>, vector<8x64xf32>
    %c5 = arith.constant 5 : index
    %c0_37 = arith.constant 0 : index
    %c0_38 = arith.constant 0 : index
    %159 = vector.load %arg1[%c5, %c0_37, %c0_38] : memref<8x8x256xbf16, #tpu.memory_space<vmem>>, vector<1x8x256xbf16>
    %160 = vector.shape_cast %159 : vector<1x8x256xbf16> to vector<8x256xbf16>
    %161 = arith.extf %160 : vector<8x256xbf16> to vector<8x256xf32>
    %162 = arith.truncf %157 : vector<8x64xf32> to vector<8x64xbf16>
    %cst_39 = arith.constant dense<0.000000e+00> : vector<8x256xf32>
    %163 = tpu.matmul %162, %0, %cst_39 {dimension_numbers = #tpu.dot_dimension_numbers<[1], [0], [0], [1], [0, 0, 1, 1], [], []>} : vector<8x64xbf16>, vector<64x256xbf16>, vector<8x256xf32> -> vector<8x256xf32>
    %164 = arith.addf %161, %163 : vector<8x256xf32>
    %165 = arith.negf %164 : vector<8x256xf32>
    %166 = math.exp %165 : vector<8x256xf32>
    %cst_40 = arith.constant 1.000000e+00 : f32
    %167 = vector.broadcast %cst_40 : f32 to vector<8x256xf32>
    %168 = arith.addf %167, %166 : vector<8x256xf32>
    %169 = arith.divf %167, %168 : vector<8x256xf32>
    %170 = vector.extract_strided_slice %169 {offsets = [0, 0], sizes = [8, 64], strides = [1, 1]} : vector<8x256xf32> to vector<8x64xf32>
    %171 = vector.extract_strided_slice %169 {offsets = [0, 64], sizes = [8, 64], strides = [1, 1]} : vector<8x256xf32> to vector<8x64xf32>
    %172 = vector.extract_strided_slice %169 {offsets = [0, 128], sizes = [8, 64], strides = [1, 1]} : vector<8x256xf32> to vector<8x64xf32>
    %173 = vector.extract_strided_slice %169 {offsets = [0, 192], sizes = [8, 64], strides = [1, 1]} : vector<8x256xf32> to vector<8x64xf32>
    %cst_41 = arith.constant 2.000000e+00 : f32
    %174 = vector.broadcast %cst_41 : f32 to vector<8x64xf32>
    %175 = arith.mulf %174, %173 : vector<8x64xf32>
    %cst_42 = arith.constant 1.000000e+00 : f32
    %176 = vector.broadcast %cst_42 : f32 to vector<8x64xf32>
    %177 = arith.subf %175, %176 : vector<8x64xf32>
    %178 = arith.mulf %171, %158 : vector<8x64xf32>
    %179 = arith.mulf %170, %177 : vector<8x64xf32>
    %180 = arith.addf %178, %179 : vector<8x64xf32>
    %181 = math.tanh %180 : vector<8x64xf32>
    %182 = arith.mulf %172, %181 : vector<8x64xf32>
    %c5_i32_43 = arith.constant 5 : i32
    %c2_i32_44 = arith.constant 2 : i32
    %183 = vector.broadcast %c5_i32_43 : i32 to vector<8x64xi32>
    %184 = vector.broadcast %c2_i32_44 : i32 to vector<8x64xi32>
    %185 = arith.select %6, %183, %184 : vector<8x64xi1>, vector<8x64xi32>
    %186 = arith.cmpi sgt, %3, %185 : vector<8x64xi32>
    %187 = arith.select %186, %182, %157 : vector<8x64xi1>, vector<8x64xf32>
    %188 = arith.select %186, %180, %158 : vector<8x64xi1>, vector<8x64xf32>
    %c6 = arith.constant 6 : index
    %c0_45 = arith.constant 0 : index
    %c0_46 = arith.constant 0 : index
    %189 = vector.load %arg1[%c6, %c0_45, %c0_46] : memref<8x8x256xbf16, #tpu.memory_space<vmem>>, vector<1x8x256xbf16>
    %190 = vector.shape_cast %189 : vector<1x8x256xbf16> to vector<8x256xbf16>
    %191 = arith.extf %190 : vector<8x256xbf16> to vector<8x256xf32>
    %192 = arith.truncf %187 : vector<8x64xf32> to vector<8x64xbf16>
    %cst_47 = arith.constant dense<0.000000e+00> : vector<8x256xf32>
    %193 = tpu.matmul %192, %0, %cst_47 {dimension_numbers = #tpu.dot_dimension_numbers<[1], [0], [0], [1], [0, 0, 1, 1], [], []>} : vector<8x64xbf16>, vector<64x256xbf16>, vector<8x256xf32> -> vector<8x256xf32>
    %194 = arith.addf %191, %193 : vector<8x256xf32>
    %195 = arith.negf %194 : vector<8x256xf32>
    %196 = math.exp %195 : vector<8x256xf32>
    %cst_48 = arith.constant 1.000000e+00 : f32
    %197 = vector.broadcast %cst_48 : f32 to vector<8x256xf32>
    %198 = arith.addf %197, %196 : vector<8x256xf32>
    %199 = arith.divf %197, %198 : vector<8x256xf32>
    %200 = vector.extract_strided_slice %199 {offsets = [0, 0], sizes = [8, 64], strides = [1, 1]} : vector<8x256xf32> to vector<8x64xf32>
    %201 = vector.extract_strided_slice %199 {offsets = [0, 64], sizes = [8, 64], strides = [1, 1]} : vector<8x256xf32> to vector<8x64xf32>
    %202 = vector.extract_strided_slice %199 {offsets = [0, 128], sizes = [8, 64], strides = [1, 1]} : vector<8x256xf32> to vector<8x64xf32>
    %203 = vector.extract_strided_slice %199 {offsets = [0, 192], sizes = [8, 64], strides = [1, 1]} : vector<8x256xf32> to vector<8x64xf32>
    %cst_49 = arith.constant 2.000000e+00 : f32
    %204 = vector.broadcast %cst_49 : f32 to vector<8x64xf32>
    %205 = arith.mulf %204, %203 : vector<8x64xf32>
    %cst_50 = arith.constant 1.000000e+00 : f32
    %206 = vector.broadcast %cst_50 : f32 to vector<8x64xf32>
    %207 = arith.subf %205, %206 : vector<8x64xf32>
    %208 = arith.mulf %201, %188 : vector<8x64xf32>
    %209 = arith.mulf %200, %207 : vector<8x64xf32>
    %210 = arith.addf %208, %209 : vector<8x64xf32>
    %211 = math.tanh %210 : vector<8x64xf32>
    %212 = arith.mulf %202, %211 : vector<8x64xf32>
    %c6_i32_51 = arith.constant 6 : i32
    %c1_i32_52 = arith.constant 1 : i32
    %213 = vector.broadcast %c6_i32_51 : i32 to vector<8x64xi32>
    %214 = vector.broadcast %c1_i32_52 : i32 to vector<8x64xi32>
    %215 = arith.select %6, %213, %214 : vector<8x64xi1>, vector<8x64xi32>
    %216 = arith.cmpi sgt, %3, %215 : vector<8x64xi32>
    %217 = arith.select %216, %212, %187 : vector<8x64xi1>, vector<8x64xf32>
    %218 = arith.select %216, %210, %188 : vector<8x64xi1>, vector<8x64xf32>
    %c7 = arith.constant 7 : index
    %c0_53 = arith.constant 0 : index
    %c0_54 = arith.constant 0 : index
    %219 = vector.load %arg1[%c7, %c0_53, %c0_54] : memref<8x8x256xbf16, #tpu.memory_space<vmem>>, vector<1x8x256xbf16>
    %220 = vector.shape_cast %219 : vector<1x8x256xbf16> to vector<8x256xbf16>
    %221 = arith.extf %220 : vector<8x256xbf16> to vector<8x256xf32>
    %222 = arith.truncf %217 : vector<8x64xf32> to vector<8x64xbf16>
    %cst_55 = arith.constant dense<0.000000e+00> : vector<8x256xf32>
    %223 = tpu.matmul %222, %0, %cst_55 {dimension_numbers = #tpu.dot_dimension_numbers<[1], [0], [0], [1], [0, 0, 1, 1], [], []>} : vector<8x64xbf16>, vector<64x256xbf16>, vector<8x256xf32> -> vector<8x256xf32>
    %224 = arith.addf %221, %223 : vector<8x256xf32>
    %225 = arith.negf %224 : vector<8x256xf32>
    %226 = math.exp %225 : vector<8x256xf32>
    %cst_56 = arith.constant 1.000000e+00 : f32
    %227 = vector.broadcast %cst_56 : f32 to vector<8x256xf32>
    %228 = arith.addf %227, %226 : vector<8x256xf32>
    %229 = arith.divf %227, %228 : vector<8x256xf32>
    %230 = vector.extract_strided_slice %229 {offsets = [0, 0], sizes = [8, 64], strides = [1, 1]} : vector<8x256xf32> to vector<8x64xf32>
    %231 = vector.extract_strided_slice %229 {offsets = [0, 64], sizes = [8, 64], strides = [1, 1]} : vector<8x256xf32> to vector<8x64xf32>
    %232 = vector.extract_strided_slice %229 {offsets = [0, 128], sizes = [8, 64], strides = [1, 1]} : vector<8x256xf32> to vector<8x64xf32>
    %233 = vector.extract_strided_slice %229 {offsets = [0, 192], sizes = [8, 64], strides = [1, 1]} : vector<8x256xf32> to vector<8x64xf32>
    %cst_57 = arith.constant 2.000000e+00 : f32
    %234 = vector.broadcast %cst_57 : f32 to vector<8x64xf32>
    %235 = arith.mulf %234, %233 : vector<8x64xf32>
    %cst_58 = arith.constant 1.000000e+00 : f32
    %236 = vector.broadcast %cst_58 : f32 to vector<8x64xf32>
    %237 = arith.subf %235, %236 : vector<8x64xf32>
    %238 = arith.mulf %231, %218 : vector<8x64xf32>
    %239 = arith.mulf %230, %237 : vector<8x64xf32>
    %240 = arith.addf %238, %239 : vector<8x64xf32>
    %241 = math.tanh %240 : vector<8x64xf32>
    %242 = arith.mulf %232, %241 : vector<8x64xf32>
    %c7_i32_59 = arith.constant 7 : i32
    %c0_i32_60 = arith.constant 0 : i32
    %243 = vector.broadcast %c7_i32_59 : i32 to vector<8x64xi32>
    %244 = vector.broadcast %c0_i32_60 : i32 to vector<8x64xi32>
    %245 = arith.select %6, %243, %244 : vector<8x64xi1>, vector<8x64xi32>
    %246 = arith.cmpi sgt, %3, %245 : vector<8x64xi32>
    %247 = arith.select %246, %242, %217 : vector<8x64xi1>, vector<8x64xf32>
    %c0_61 = arith.constant 0 : index
    %c0_62 = arith.constant 0 : index
    %248 = vector.load %arg3[%c0_61, %c0_62] : memref<64x128xf32, #tpu.memory_space<vmem>>, vector<64x128xf32>
    %cst_63 = arith.constant dense<0.000000e+00> : vector<8x128xf32>
    %249 = tpu.matmul %247, %248, %cst_63 {dimension_numbers = #tpu.dot_dimension_numbers<[1], [0], [0], [1], [0, 0, 1, 1], [], []>} : vector<8x64xf32>, vector<64x128xf32>, vector<8x128xf32> -> vector<8x128xf32>
    %c0_64 = arith.constant 0 : index
    %c0_65 = arith.constant 0 : index
    %250 = vector.load %arg4[%c0_64, %c0_65] : memref<1x128xf32, #tpu.memory_space<vmem>>, vector<1x128xf32>
    %251 = vector.broadcast %250 : vector<1x128xf32> to vector<8x128xf32>
    %252 = arith.addf %249, %251 : vector<8x128xf32>
    %c0_66 = arith.constant 0 : index
    %c0_67 = arith.constant 0 : index
    %253 = vector.load %arg5[%c0_66, %c0_67] : memref<8x128xf32, #tpu.memory_space<vmem>>, vector<8x128xf32>
    tpu.vector_store %arg5[%c0_66, %c0_67], %252 {strides = array<i32>} : memref<8x128xf32, #tpu.memory_space<vmem>>, vector<8x128xf32>,
    return
  }
}

</mosaic_0001>

<llo_original>
// kernel: tpu_custom_call.1
$region0: #{tpu_custom_call.1}
  #allocation0 [shape = 'u32[]', space=smem, size = 0x4, offset = 0x4, fixed_abs, tag = 'smem constant byte address 0x4 - core index']
  #allocation1 [shape = 'u32[144,128]{1,0:T(1,128)}', space=vmem, size = 0x12000, scoped, tag = 'internal scratch']
  %s0 = inlined_call_operand.vmem [shape: s32[8,1], index: 0, kind: input, shape index: {}]
  %s1 = inlined_call_operand.hbm [shape: bf16[8,8,256], index: 1, kind: input, shape index: {}]
  %s2 = inlined_call_operand.hbm [shape: bf16[64,256], index: 2, kind: input, shape index: {}]
  %s3 = inlined_call_operand.hbm [shape: f32[64,128], index: 3, kind: input, shape index: {}]
  %s4 = inlined_call_operand.vmem [shape: f32[1,128], index: 4, kind: input, shape index: {}]
  %s5 = inlined_call_operand.hbm [shape: f32[8,128], index: 5, kind: output, shape index: {}]
  %s6 = sld [smem:[#allocation0]]
  $region42: #{tpu_custom_call.1} parent=0
    _
  %s8 = ssub.s32 1, %s6
  %s9 = scalar_select 0, %s8, %s6
  $region1: #{tpu_custom_call.1} parent=0
    #allocation2 [shape = 'u8[32768]{0}', space=vmem, size = 0x8000, scoped, tag = 'input window, operand 1, single buffered']
    #allocation3 [shape = 's32[1]{0}', space=sflag, size = 0x4, scoped, tag = 'scoped memory for tpu_custom_call.1']
    #allocation4 [shape = 's32[1]{0}', space=sflag, size = 0x4, scoped, tag = 'scoped memory for tpu_custom_call.1']
    #allocation5 [shape = 'u8[32768]{0}', space=vmem, size = 0x8000, scoped, tag = 'input window, operand 2, single buffered']
    #allocation6 [shape = 's32[1]{0}', space=sflag, size = 0x4, scoped, tag = 'scoped memory for tpu_custom_call.1']
    #allocation7 [shape = 'u8[32768]{0}', space=vmem, size = 0x8000, scoped, tag = 'input window, operand 3, single buffered']
    #allocation8 [shape = 'u8[4096]{0}', space=vmem, size = 0x1000, scoped, tag = 'output window, operand 0, single buffered']
    %10 = vsyncpa [#allocation3], 0
    %11 = vsyncpa [#allocation6], 0
    %12 = vsyncpa [#allocation4], 0
    // Predicated region
    $region2: #{tpu_custom_call.1} parent=1 // pred_check
      _
    $region3: #{tpu_custom_call.1} parent=1 // pred_check_branch
      %14 = sbr.rel (0) target = $region5
    $region4: #{tpu_custom_call.1} parent=1 // pred_region
      _
    $region5: #{tpu_custom_call.1} parent=1 // pred_fallthru
      _
    // Predicated region
    $region6: #{tpu_custom_call.1} parent=1 // pred_check
      _
    $region7: #{tpu_custom_call.1} parent=1 // pred_check_branch
      %16 = sbr.rel (0) target = $region9
    $region8: #{tpu_custom_call.1} parent=1 // pred_region
      %s18 = ssub.s32 1024, 1024
      %19 = vsyncadd [#allocation3], %s18
      %s20 = sshll.u32 [#allocation2], 4
      %s21 = int_to_ptr.vmem [resolvable:$true] %s20
      %26 = dma.hbm_to_vmem [thread:$0]  %s1, 1024, %s21, [#allocation3], 128, 128, 8
    $region9: #{tpu_custom_call.1} parent=1 // pred_fallthru
      _
    // Predicated region
    $region10: #{tpu_custom_call.1} parent=1 // pred_check
      _
    $region11: #{tpu_custom_call.1} parent=1 // pred_check_branch
      %28 = sbr.rel (0) target = $region13
    $region12: #{tpu_custom_call.1} parent=1 // pred_region
      %s30 = ssub.s32 1024, 1024
      %31 = vsyncadd [#allocation6], %s30
      %s32 = sshll.u32 [#allocation5], 4
      %s33 = int_to_ptr.vmem [resolvable:$true] %s32
      %38 = dma.hbm_to_vmem [thread:$0]  %s2, 1024, %s33, [#allocation6], 128, 128, 8
    $region13: #{tpu_custom_call.1} parent=1 // pred_fallthru
      _
    // Predicated region
    $region14: #{tpu_custom_call.1} parent=1 // pred_check
      _
    $region15: #{tpu_custom_call.1} parent=1 // pred_check_branch
      %40 = sbr.rel (0) target = $region17
    $region16: #{tpu_custom_call.1} parent=1 // pred_region
      %s42 = ssub.s32 1024, 1024
      %43 = vsyncadd [#allocation6], %s42
      %s44 = sshll.u32 [#allocation7], 4
      %s45 = int_to_ptr.vmem [resolvable:$true] %s44
      %50 = dma.hbm_to_vmem [thread:$0]  %s3, 1024, %s45, [#allocation6], 128, 128, 8
    $region17: #{tpu_custom_call.1} parent=1 // pred_fallthru
      _
    // Predicated region
    $region18: #{tpu_custom_call.1} parent=1 // pred_check
      _
    $region19: #{tpu_custom_call.1} parent=1 // pred_check_branch
      %52 = sbr.rel (0) target = $region21
    $region20: #{tpu_custom_call.1} parent=1 // pred_region
      _
    $region21: #{tpu_custom_call.1} parent=1 // pred_fallthru
      _
    // Predicated region
    $region22: #{tpu_custom_call.1} parent=1 // pred_check
      _
    $region23: #{tpu_custom_call.1} parent=1 // pred_check_branch
      %54 = sbr.rel (0) target = $region25
    $region24: #{tpu_custom_call.1} parent=1 // pred_region
      %55 = dma.done [#allocation3], 1024
    $region25: #{tpu_custom_call.1} parent=1 // pred_fallthru
      _
    // Predicated region
    $region26: #{tpu_custom_call.1} parent=1 // pred_check
      _
    $region27: #{tpu_custom_call.1} parent=1 // pred_check_branch
      %57 = sbr.rel (0) target = $region29
    $region28: #{tpu_custom_call.1} parent=1 // pred_region
      %58 = dma.done [#allocation6], 1024
    $region29: #{tpu_custom_call.1} parent=1 // pred_fallthru
      _
    // Predicated region
    $region30: #{tpu_custom_call.1} parent=1 // pred_check
      _
    $region31: #{tpu_custom_call.1} parent=1 // pred_check_branch
      %60 = sbr.rel (0) target = $region33
    $region32: #{tpu_custom_call.1} parent=1 // pred_region
      %61 = dma.done [#allocation6], 1024
    $region33: #{tpu_custom_call.1} parent=1 // pred_fallthru
      _
    %v63 = vld [vmem:[#allocation5] sm:$0xff]
    %v64 = vld [vmem:[#allocation5 + $0x8] sm:$0xff]
    %v65 = vld [vmem:[#allocation5 + $0x10] sm:$0xff]
    %v66 = vld [vmem:[#allocation5 + $0x18] sm:$0xff]
    %v67 = vld [vmem:[#allocation5 + $0x20] sm:$0xff]
    %v68 = vld [vmem:[#allocation5 + $0x28] sm:$0xff]
    %v69 = vld [vmem:[#allocation5 + $0x30] sm:$0xff]
    %v70 = vld [vmem:[#allocation5 + $0x38] sm:$0xff]
    %v71 = vld [vmem:[%s0] sm:$0xff]
    %72 = vset.pattern.permute.xlu0 0
    %73 = vperm.xlu0 %72, %v71
    %v74 = vpop.permute.xlu0 %73
    %v75 = vlaneseq
    %v76 = vand.u32 %v75, 127
    %vm77 = vcmp.lt.s32.totalorder %v76, 32
    %v78 = vld [vmem:[#allocation2] sm:$0xff]
    %v79 = vunpack.c.l.bf16 %v78
    %v80 = vunpack.c.h.bf16 %v78
    %v89 = vunpack.c.l.b16 %v63
    %v90 = vunpack.c.h.b16 %v63
    %v91 = vunpack.c.l.b16 %v64
    %v92 = vunpack.c.h.b16 %v64
    %v93 = vunpack.c.l.b16 %v65
    %v94 = vunpack.c.h.b16 %v65
    %v95 = vunpack.c.l.b16 %v66
    %v96 = vunpack.c.h.b16 %v66
    %v97 = vunpack.c.l.b16 %v67
    %v98 = vunpack.c.h.b16 %v67
    %v99 = vunpack.c.l.b16 %v68
    %v100 = vunpack.c.h.b16 %v68
    %v101 = vunpack.c.l.b16 %v69
    %v102 = vunpack.c.h.b16 %v69
    %v103 = vunpack.c.l.b16 %v70
    %v104 = vunpack.c.h.b16 %v70
    %v105 = vpack.c.b16 %v91, %v89
    %v106 = vpack.c.b16 %v92, %v90
    %v107 = vpack.c.b16 %v95, %v93
    %v108 = vpack.c.b16 %v96, %v94
    %v109 = vpack.c.b16 %v99, %v97
    %v110 = vpack.c.b16 %v100, %v98
    %v111 = vpack.c.b16 %v103, %v101
    %v112 = vpack.c.b16 %v104, %v102
    %vm121 = vcmask 523264
    %v123 = vsel %vm121, 0, 0
    %125 = vmatprep.subr.bf16.mxu0 0
    %126 = vmatpush1.bf16.msra.mxu0 0
    %127 = vmatprep.subr.bf16.mxu0 0
    %128 = vmatpush1.bf16.msra.mxu0 0
    %129 = vmatprep.subr.bf16.mxu0 0
    %130 = vmatpush1.bf16.msra.mxu0 0
    %131 = vmatprep.subr.bf16.mxu0 0
    %132 = vmatpush1.bf16.msra.mxu0 0
    %133 = vmatprep.subr.bf16.mxu0 %v112
    %134 = vmatpush1.bf16.msra.mxu0 %v111
    %135 = vmatprep.subr.bf16.mxu0 %v110
    %136 = vmatpush1.bf16.msra.mxu0 %v109
    %137 = vmatprep.subr.bf16.mxu0 %v108
    %138 = vmatpush1.bf16.msra.mxu0 %v107
    %139 = vmatprep.subr.bf16.mxu0 %v106
    %140 = vmatpush1.bf16.msra.mxu0 %v105
    %141 = vmatprep.subr.bf16.mxu0 0
    %142 = vmatpush2.bf16.msra.mxu0 0
    %143 = vmatprep.subr.bf16.mxu0 0
    %144 = vmatpush2.bf16.msra.mxu0 0
    %145 = vmatprep.subr.bf16.mxu0 0
    %146 = vmatpush2.bf16.msra.mxu0 0
    %147 = vmatprep.subr.bf16.mxu0 0
    %148 = vmatpush2.bf16.msra.mxu0 0
    %149 = vmatprep.subr.bf16.mxu0 0
    %150 = vmatpush2.bf16.msra.mxu0 0
    %151 = vmatprep.subr.bf16.mxu0 0
    %152 = vmatpush2.bf16.msra.mxu0 0
    %153 = vmatprep.subr.bf16.mxu0 0
    %154 = vmatpush2.bf16.msra.mxu0 0
    %155 = vmatprep.subr.bf16.mxu0 0
    %156 = vmatpush2.bf16.msra.mxu0 0
    %157 = vmatprep.mubr.bf16.mxu0 0
    %158 = vmatmul.mubr.bf16.gmra.mxu0 %v123
    %v159 = vpop.f32.mrf.mxu0
    %v160 = vadd.f32 0.0, %v159
    %v161 = vpop.f32.mrf.mxu0
    %v162 = vadd.f32 0.0, %v161
    %v163 = vpop.f32.mrf.mxu0
    %v164 = vpop.f32.mrf.mxu0
    %165 = vdwg.mxu0
    %v166 = vadd.f32 %v79, %v160
    %v167 = vadd.f32 %v80, %v162
    %v168 = vxor.u32 %v166, 2147483648
    %v169 = vxor.u32 %v167, 2147483648
    %v170 = vmul.f32 %v168, 1.442695
    %v171 = vpow.pop %v170
    %v172 = vmul.f32 %v169, 1.442695
    %v173 = vpow.pop %v172
    %v174 = vadd.f32 %v171, 1.0
    %v175 = vadd.f32 %v173, 1.0
    %v176 = vrcp.pop %v174
    %v177 = vmul.f32 1.0, %v176
    %v178 = vrcp.pop %v175
    %v179 = vmul.f32 1.0, %v178
    %v180 = vmul.f32 %v179, 2.0
    %v181 = vsub.f32 %v180, 1.0
    %v182 = vmul.f32 %v177, 0.0
    %184 = vrot.lane.b32.xlu0 %v181, 64
    %v185 = vpop.permute.xlu0 %184
    %v187 = vmul.f32 %v177, %v185
    %189 = vrot.lane.b32.xlu0 %v187, 64
    %v190 = vpop.permute.xlu0 %189
    %v192 = vadd.f32 %v182, %v190
    %v193 = vtanh.pop %v192
    %195 = vrot.lane.b32.xlu0 %v193, 64
    %v196 = vpop.permute.xlu0 %195
    %v198 = vmul.f32 %v179, %v196
    %v199 = vsel %vm77, 0, 7
    %vm200 = vcmp.gt.s32.totalorder %v74, %v199
    %v201 = vsel %vm200, %v198, 0.0
    %203 = vrot.lane.b32.xlu0 %v192, 64
    %v204 = vpop.permute.xlu0 %203
    %v206 = vsel %vm200, %v204, 0.0
    %s207 = scalar_lea.vmem [#allocation2], 8
    %v208 = vld [vmem:[%s207] sm:$0xff]
    %v209 = vunpack.c.l.bf16 %v208
    %v210 = vunpack.c.h.bf16 %v208
    %v211 = vpack.c.bf16 %v201, %v201
    %v213 = vsel %vm121, %v211, 0
    %215 = vmatprep.subr.bf16.mxu0 0
    %216 = vmatpush1.bf16.msra.mxu0 0
    %217 = vmatprep.subr.bf16.mxu0 0
    %218 = vmatpush1.bf16.msra.mxu0 0
    %219 = vmatprep.subr.bf16.mxu0 0
    %220 = vmatpush1.bf16.msra.mxu0 0
    %221 = vmatprep.subr.bf16.mxu0 0
    %222 = vmatpush1.bf16.msra.mxu0 0
    %223 = vmatprep.subr.bf16.mxu0 %v112
    %224 = vmatpush1.bf16.msra.mxu0 %v111
    %225 = vmatprep.subr.bf16.mxu0 %v110
    %226 = vmatpush1.bf16.msra.mxu0 %v109
    %227 = vmatprep.subr.bf16.mxu0 %v108
    %228 = vmatpush1.bf16.msra.mxu0 %v107
    %229 = vmatprep.subr.bf16.mxu0 %v106
    %230 = vmatpush1.bf16.msra.mxu0 %v105
    %231 = vmatprep.subr.bf16.mxu0 0
    %232 = vmatpush2.bf16.msra.mxu0 0
    %233 = vmatprep.subr.bf16.mxu0 0
    %234 = vmatpush2.bf16.msra.mxu0 0
    %235 = vmatprep.subr.bf16.mxu0 0
    %236 = vmatpush2.bf16.msra.mxu0 0
    %237 = vmatprep.subr.bf16.mxu0 0
    %238 = vmatpush2.bf16.msra.mxu0 0
    %239 = vmatprep.subr.bf16.mxu0 0
    %240 = vmatpush2.bf16.msra.mxu0 0
    %241 = vmatprep.subr.bf16.mxu0 0
    %242 = vmatpush2.bf16.msra.mxu0 0
    %243 = vmatprep.subr.bf16.mxu0 0
    %244 = vmatpush2.bf16.msra.mxu0 0
    %245 = vmatprep.subr.bf16.mxu0 0
    %246 = vmatpush2.bf16.msra.mxu0 0
    %247 = vmatprep.mubr.bf16.mxu0 0
    %248 = vmatmul.mubr.bf16.gmra.mxu0 %v213
    %v249 = vpop.f32.mrf.mxu0
    %v250 = vadd.f32 0.0, %v249
    %v251 = vpop.f32.mrf.mxu0
    %v252 = vadd.f32 0.0, %v251
    %v253 = vpop.f32.mrf.mxu0
    %v254 = vpop.f32.mrf.mxu0
    %255 = vdwg.mxu0
    %v256 = vadd.f32 %v209, %v250
    %v257 = vadd.f32 %v210, %v252
    %v258 = vxor.u32 %v256, 2147483648
    %v259 = vxor.u32 %v257, 2147483648
    %v260 = vmul.f32 %v258, 1.442695
    %v261 = vpow.pop %v260
    %v262 = vmul.f32 %v259, 1.442695
    %v263 = vpow.pop %v262
    %v264 = vadd.f32 %v261, 1.0
    %v265 = vadd.f32 %v263, 1.0
    %v266 = vrcp.pop %v264
    %v267 = vmul.f32 1.0, %v266
    %v268 = vrcp.pop %v265
    %v269 = vmul.f32 1.0, %v268
    %v270 = vmul.f32 %v269, 2.0
    %v271 = vsub.f32 %v270, 1.0
    %273 = vrot.lane.b32.xlu0 %v206, 64
    %v274 = vpop.permute.xlu0 %273
    %v276 = vmul.f32 %v267, %v274
    %278 = vrot.lane.b32.xlu0 %v271, 64
    %v279 = vpop.permute.xlu0 %278
    %v281 = vmul.f32 %v267, %v279
    %283 = vrot.lane.b32.xlu0 %v281, 64
    %v284 = vpop.permute.xlu0 %283
    %v286 = vadd.f32 %v276, %v284
    %v287 = vtanh.pop %v286
    %289 = vrot.lane.b32.xlu0 %v287, 64
    %v290 = vpop.permute.xlu0 %289
    %v292 = vmul.f32 %v269, %v290
    %v293 = vsel %vm77, 1, 6
    %vm294 = vcmp.gt.s32.totalorder %v74, %v293
    %v295 = vsel %vm294, %v292, %v201
    %297 = vrot.lane.b32.xlu0 %v286, 64
    %v298 = vpop.permute.xlu0 %297
    %v300 = vsel %vm294, %v298, %v206
    %s301 = scalar_lea.vmem [#allocation2], 16
    %v302 = vld [vmem:[%s301] sm:$0xff]
    %v303 = vunpack.c.l.bf16 %v302
    %v304 = vunpack.c.h.bf16 %v302
    %v305 = vpack.c.bf16 %v295, %v295
    %v307 = vsel %vm121, %v305, 0
    %309 = vmatprep.subr.bf16.mxu0 0
    %310 = vmatpush1.bf16.msra.mxu0 0
    %311 = vmatprep.subr.bf16.mxu0 0
    %312 = vmatpush1.bf16.msra.mxu0 0
    %313 = vmatprep.subr.bf16.mxu0 0
    %314 = vmatpush1.bf16.msra.mxu0 0
    %315 = vmatprep.subr.bf16.mxu0 0
    %316 = vmatpush1.bf16.msra.mxu0 0
    %317 = vmatprep.subr.bf16.mxu0 %v112
    %318 = vmatpush1.bf16.msra.mxu0 %v111
    %319 = vmatprep.subr.bf16.mxu0 %v110
    %320 = vmatpush1.bf16.msra.mxu0 %v109
    %321 = vmatprep.subr.bf16.mxu0 %v108
    %322 = vmatpush1.bf16.msra.mxu0 %v107
    %323 = vmatprep.subr.bf16.mxu0 %v106
    %324 = vmatpush1.bf16.msra.mxu0 %v105
    %325 = vmatprep.subr.bf16.mxu0 0
    %326 = vmatpush2.bf16.msra.mxu0 0
    %327 = vmatprep.subr.bf16.mxu0 0
    %328 = vmatpush2.bf16.msra.mxu0 0
    %329 = vmatprep.subr.bf16.mxu0 0
    %330 = vmatpush2.bf16.msra.mxu0 0
    %331 = vmatprep.subr.bf16.mxu0 0
    %332 = vmatpush2.bf16.msra.mxu0 0
    %333 = vmatprep.subr.bf16.mxu0 0
    %334 = vmatpush2.bf16.msra.mxu0 0
    %335 = vmatprep.subr.bf16.mxu0 0
    %336 = vmatpush2.bf16.msra.mxu0 0
    %337 = vmatprep.subr.bf16.mxu0 0
    %338 = vmatpush2.bf16.msra.mxu0 0
    %339 = vmatprep.subr.bf16.mxu0 0
    %340 = vmatpush2.bf16.msra.mxu0 0
    %341 = vmatprep.mubr.bf16.mxu0 0
    %342 = vmatmul.mubr.bf16.gmra.mxu0 %v307
    %v343 = vpop.f32.mrf.mxu0
    %v344 = vadd.f32 0.0, %v343
    %v345 = vpop.f32.mrf.mxu0
    %v346 = vadd.f32 0.0, %v345
    %v347 = vpop.f32.mrf.mxu0
    %v348 = vpop.f32.mrf.mxu0
    %349 = vdwg.mxu0
    %v350 = vadd.f32 %v303, %v344
    %v351 = vadd.f32 %v304, %v346
    %v352 = vxor.u32 %v350, 2147483648
    %v353 = vxor.u32 %v351, 2147483648
    %v354 = vmul.f32 %v352, 1.442695
    %v355 = vpow.pop %v354
    %v356 = vmul.f32 %v353, 1.442695
    %v357 = vpow.pop %v356
    %v358 = vadd.f32 %v355, 1.0
    %v359 = vadd.f32 %v357, 1.0
    %v360 = vrcp.pop %v358
    %v361 = vmul.f32 1.0, %v360
    %v362 = vrcp.pop %v359
    %v363 = vmul.f32 1.0, %v362
    %v364 = vmul.f32 %v363, 2.0
    %v365 = vsub.f32 %v364, 1.0
    %367 = vrot.lane.b32.xlu0 %v300, 64
    %v368 = vpop.permute.xlu0 %367
    %v370 = vmul.f32 %v361, %v368
    %372 = vrot.lane.b32.xlu0 %v365, 64
    %v373 = vpop.permute.xlu0 %372
    %v375 = vmul.f32 %v361, %v373
    %377 = vrot.lane.b32.xlu0 %v375, 64
    %v378 = vpop.permute.xlu0 %377
    %v380 = vadd.f32 %v370, %v378
    %v381 = vtanh.pop %v380
    %383 = vrot.lane.b32.xlu0 %v381, 64
    %v384 = vpop.permute.xlu0 %383
    %v386 = vmul.f32 %v363, %v384
    %v387 = vsel %vm77, 2, 5
    %vm388 = vcmp.gt.s32.totalorder %v74, %v387
    %v389 = vsel %vm388, %v386, %v295
    %391 = vrot.lane.b32.xlu0 %v380, 64
    %v392 = vpop.permute.xlu0 %391
    %v394 = vsel %vm388, %v392, %v300
    %s395 = scalar_lea.vmem [#allocation2], 24
    %v396 = vld [vmem:[%s395] sm:$0xff]
    %v397 = vunpack.c.l.bf16 %v396
    %v398 = vunpack.c.h.bf16 %v396
    %v399 = vpack.c.bf16 %v389, %v389
    %v401 = vsel %vm121, %v399, 0
    %403 = vmatprep.subr.bf16.mxu0 0
    %404 = vmatpush1.bf16.msra.mxu0 0
    %405 = vmatprep.subr.bf16.mxu0 0
    %406 = vmatpush1.bf16.msra.mxu0 0
    %407 = vmatprep.subr.bf16.mxu0 0
    %408 = vmatpush1.bf16.msra.mxu0 0
    %409 = vmatprep.subr.bf16.mxu0 0
    %410 = vmatpush1.bf16.msra.mxu0 0
    %411 = vmatprep.subr.bf16.mxu0 %v112
    %412 = vmatpush1.bf16.msra.mxu0 %v111
    %413 = vmatprep.subr.bf16.mxu0 %v110
    %414 = vmatpush1.bf16.msra.mxu0 %v109
    %415 = vmatprep.subr.bf16.mxu0 %v108
    %416 = vmatpush1.bf16.msra.mxu0 %v107
    %417 = vmatprep.subr.bf16.mxu0 %v106
    %418 = vmatpush1.bf16.msra.mxu0 %v105
    %419 = vmatprep.subr.bf16.mxu0 0
    %420 = vmatpush2.bf16.msra.mxu0 0
    %421 = vmatprep.subr.bf16.mxu0 0
    %422 = vmatpush2.bf16.msra.mxu0 0
    %423 = vmatprep.subr.bf16.mxu0 0
    %424 = vmatpush2.bf16.msra.mxu0 0
    %425 = vmatprep.subr.bf16.mxu0 0
    %426 = vmatpush2.bf16.msra.mxu0 0
    %427 = vmatprep.subr.bf16.mxu0 0
    %428 = vmatpush2.bf16.msra.mxu0 0
    %429 = vmatprep.subr.bf16.mxu0 0
    %430 = vmatpush2.bf16.msra.mxu0 0
    %431 = vmatprep.subr.bf16.mxu0 0
    %432 = vmatpush2.bf16.msra.mxu0 0
    %433 = vmatprep.subr.bf16.mxu0 0
    %434 = vmatpush2.bf16.msra.mxu0 0
    %435 = vmatprep.mubr.bf16.mxu0 0
    %436 = vmatmul.mubr.bf16.gmra.mxu0 %v401
    %v437 = vpop.f32.mrf.mxu0
    %v438 = vadd.f32 0.0, %v437
    %v439 = vpop.f32.mrf.mxu0
    %v440 = vadd.f32 0.0, %v439
    %v441 = vpop.f32.mrf.mxu0
    %v442 = vpop.f32.mrf.mxu0
    %443 = vdwg.mxu0
    %v444 = vadd.f32 %v397, %v438
    %v445 = vadd.f32 %v398, %v440
    %v446 = vxor.u32 %v444, 2147483648
    %v447 = vxor.u32 %v445, 2147483648
    %v448 = vmul.f32 %v446, 1.442695
    %v449 = vpow.pop %v448
    %v450 = vmul.f32 %v447, 1.442695
    %v451 = vpow.pop %v450
    %v452 = vadd.f32 %v449, 1.0
    %v453 = vadd.f32 %v451, 1.0
    %v454 = vrcp.pop %v452
    %v455 = vmul.f32 1.0, %v454
    %v456 = vrcp.pop %v453
    %v457 = vmul.f32 1.0, %v456
    %v458 = vmul.f32 %v457, 2.0
    %v459 = vsub.f32 %v458, 1.0
    %461 = vrot.lane.b32.xlu0 %v394, 64
    %v462 = vpop.permute.xlu0 %461
    %v464 = vmul.f32 %v455, %v462
    %466 = vrot.lane.b32.xlu0 %v459, 64
    %v467 = vpop.permute.xlu0 %466
    %v469 = vmul.f32 %v455, %v467
    %471 = vrot.lane.b32.xlu0 %v469, 64
    %v472 = vpop.permute.xlu0 %471
    %v474 = vadd.f32 %v464, %v472
    %v475 = vtanh.pop %v474
    %477 = vrot.lane.b32.xlu0 %v475, 64
    %v478 = vpop.permute.xlu0 %477
    %v480 = vmul.f32 %v457, %v478
    %v481 = vsel %vm77, 3, 4
    %vm482 = vcmp.gt.s32.totalorder %v74, %v481
    %v483 = vsel %vm482, %v480, %v389
    %485 = vrot.lane.b32.xlu0 %v474, 64
    %v486 = vpop.permute.xlu0 %485
    %v488 = vsel %vm482, %v486, %v394
    %s489 = scalar_lea.vmem [#allocation2], 32
    %v490 = vld [vmem:[%s489] sm:$0xff]
    %v491 = vunpack.c.l.bf16 %v490
    %v492 = vunpack.c.h.bf16 %v490
    %v493 = vpack.c.bf16 %v483, %v483
    %v495 = vsel %vm121, %v493, 0
    %497 = vmatprep.subr.bf16.mxu0 0
    %498 = vmatpush1.bf16.msra.mxu0 0
    %499 = vmatprep.subr.bf16.mxu0 0
    %500 = vmatpush1.bf16.msra.mxu0 0
    %501 = vmatprep.subr.bf16.mxu0 0
    %502 = vmatpush1.bf16.msra.mxu0 0
    %503 = vmatprep.subr.bf16.mxu0 0
    %504 = vmatpush1.bf16.msra.mxu0 0
    %505 = vmatprep.subr.bf16.mxu0 %v112
    %506 = vmatpush1.bf16.msra.mxu0 %v111
    %507 = vmatprep.subr.bf16.mxu0 %v110
    %508 = vmatpush1.bf16.msra.mxu0 %v109
    %509 = vmatprep.subr.bf16.mxu0 %v108
    %510 = vmatpush1.bf16.msra.mxu0 %v107
    %511 = vmatprep.subr.bf16.mxu0 %v106
    %512 = vmatpush1.bf16.msra.mxu0 %v105
    %513 = vmatprep.subr.bf16.mxu0 0
    %514 = vmatpush2.bf16.msra.mxu0 0
    %515 = vmatprep.subr.bf16.mxu0 0
    %516 = vmatpush2.bf16.msra.mxu0 0
    %517 = vmatprep.subr.bf16.mxu0 0
    %518 = vmatpush2.bf16.msra.mxu0 0
    %519 = vmatprep.subr.bf16.mxu0 0
    %520 = vmatpush2.bf16.msra.mxu0 0
    %521 = vmatprep.subr.bf16.mxu0 0
    %522 = vmatpush2.bf16.msra.mxu0 0
    %523 = vmatprep.subr.bf16.mxu0 0
    %524 = vmatpush2.bf16.msra.mxu0 0
    %525 = vmatprep.subr.bf16.mxu0 0
    %526 = vmatpush2.bf16.msra.mxu0 0
    %527 = vmatprep.subr.bf16.mxu0 0
    %528 = vmatpush2.bf16.msra.mxu0 0
    %529 = vmatprep.mubr.bf16.mxu0 0
    %530 = vmatmul.mubr.bf16.gmra.mxu0 %v495
    %v531 = vpop.f32.mrf.mxu0
    %v532 = vadd.f32 0.0, %v531
    %v533 = vpop.f32.mrf.mxu0
    %v534 = vadd.f32 0.0, %v533
    %v535 = vpop.f32.mrf.mxu0
    %v536 = vpop.f32.mrf.mxu0
    %537 = vdwg.mxu0
    %v538 = vadd.f32 %v491, %v532
    %v539 = vadd.f32 %v492, %v534
    %v540 = vxor.u32 %v538, 2147483648
    %v541 = vxor.u32 %v539, 2147483648
    %v542 = vmul.f32 %v540, 1.442695
    %v543 = vpow.pop %v542
    %v544 = vmul.f32 %v541, 1.442695
    %v545 = vpow.pop %v544
    %v546 = vadd.f32 %v543, 1.0
    %v547 = vadd.f32 %v545, 1.0
    %v548 = vrcp.pop %v546
    %v549 = vmul.f32 1.0, %v548
    %v550 = vrcp.pop %v547
    %v551 = vmul.f32 1.0, %v550
    %v552 = vmul.f32 %v551, 2.0
    %v553 = vsub.f32 %v552, 1.0
    %555 = vrot.lane.b32.xlu0 %v488, 64
    %v556 = vpop.permute.xlu0 %555
    %v558 = vmul.f32 %v549, %v556
    %560 = vrot.lane.b32.xlu0 %v553, 64
    %v561 = vpop.permute.xlu0 %560
    %v563 = vmul.f32 %v549, %v561
    %565 = vrot.lane.b32.xlu0 %v563, 64
    %v566 = vpop.permute.xlu0 %565
    %v568 = vadd.f32 %v558, %v566
    %v569 = vtanh.pop %v568
    %571 = vrot.lane.b32.xlu0 %v569, 64
    %v572 = vpop.permute.xlu0 %571
    %v574 = vmul.f32 %v551, %v572
    %v575 = vsel %vm77, 4, 3
    %vm576 = vcmp.gt.s32.totalorder %v74, %v575
    %v577 = vsel %vm576, %v574, %v483
    %579 = vrot.lane.b32.xlu0 %v568, 64
    %v580 = vpop.permute.xlu0 %579
    %v582 = vsel %vm576, %v580, %v488
    %s583 = scalar_lea.vmem [#allocation2], 40
    %v584 = vld [vmem:[%s583] sm:$0xff]
    %v585 = vunpack.c.l.bf16 %v584
    %v586 = vunpack.c.h.bf16 %v584
    %v587 = vpack.c.bf16 %v577, %v577
    %v589 = vsel %vm121, %v587, 0
    %591 = vmatprep.subr.bf16.mxu0 0
    %592 = vmatpush1.bf16.msra.mxu0 0
    %593 = vmatprep.subr.bf16.mxu0 0
    %594 = vmatpush1.bf16.msra.mxu0 0
    %595 = vmatprep.subr.bf16.mxu0 0
    %596 = vmatpush1.bf16.msra.mxu0 0
    %597 = vmatprep.subr.bf16.mxu0 0
    %598 = vmatpush1.bf16.msra.mxu0 0
    %599 = vmatprep.subr.bf16.mxu0 %v112
    %600 = vmatpush1.bf16.msra.mxu0 %v111
    %601 = vmatprep.subr.bf16.mxu0 %v110
    %602 = vmatpush1.bf16.msra.mxu0 %v109
    %603 = vmatprep.subr.bf16.mxu0 %v108
    %604 = vmatpush1.bf16.msra.mxu0 %v107
    %605 = vmatprep.subr.bf16.mxu0 %v106
    %606 = vmatpush1.bf16.msra.mxu0 %v105
    %607 = vmatprep.subr.bf16.mxu0 0
    %608 = vmatpush2.bf16.msra.mxu0 0
    %609 = vmatprep.subr.bf16.mxu0 0
    %610 = vmatpush2.bf16.msra.mxu0 0
    %611 = vmatprep.subr.bf16.mxu0 0
    %612 = vmatpush2.bf16.msra.mxu0 0
    %613 = vmatprep.subr.bf16.mxu0 0
    %614 = vmatpush2.bf16.msra.mxu0 0
    %615 = vmatprep.subr.bf16.mxu0 0
    %616 = vmatpush2.bf16.msra.mxu0 0
    %617 = vmatprep.subr.bf16.mxu0 0
    %618 = vmatpush2.bf16.msra.mxu0 0
    %619 = vmatprep.subr.bf16.mxu0 0
    %620 = vmatpush2.bf16.msra.mxu0 0
    %621 = vmatprep.subr.bf16.mxu0 0
    %622 = vmatpush2.bf16.msra.mxu0 0
    %623 = vmatprep.mubr.bf16.mxu0 0
    %624 = vmatmul.mubr.bf16.gmra.mxu0 %v589
    %v625 = vpop.f32.mrf.mxu0
    %v626 = vadd.f32 0.0, %v625
    %v627 = vpop.f32.mrf.mxu0
    %v628 = vadd.f32 0.0, %v627
    %v629 = vpop.f32.mrf.mxu0
    %v630 = vpop.f32.mrf.mxu0
    %631 = vdwg.mxu0
    %v632 = vadd.f32 %v585, %v626
    %v633 = vadd.f32 %v586, %v628
    %v634 = vxor.u32 %v632, 2147483648
    %v635 = vxor.u32 %v633, 2147483648
    %v636 = vmul.f32 %v634, 1.442695
    %v637 = vpow.pop %v636
    %v638 = vmul.f32 %v635, 1.442695
    %v639 = vpow.pop %v638
    %v640 = vadd.f32 %v637, 1.0
    %v641 = vadd.f32 %v639, 1.0
    %v642 = vrcp.pop %v640
    %v643 = vmul.f32 1.0, %v642
    %v644 = vrcp.pop %v641
    %v645 = vmul.f32 1.0, %v644
    %v646 = vmul.f32 %v645, 2.0
    %v647 = vsub.f32 %v646, 1.0
    %649 = vrot.lane.b32.xlu0 %v582, 64
    %v650 = vpop.permute.xlu0 %649
    %v652 = vmul.f32 %v643, %v650
    %654 = vrot.lane.b32.xlu0 %v647, 64
    %v655 = vpop.permute.xlu0 %654
    %v657 = vmul.f32 %v643, %v655
    %659 = vrot.lane.b32.xlu0 %v657, 64
    %v660 = vpop.permute.xlu0 %659
    %v662 = vadd.f32 %v652, %v660
    %v663 = vtanh.pop %v662
    %665 = vrot.lane.b32.xlu0 %v663, 64
    %v666 = vpop.permute.xlu0 %665
    %v668 = vmul.f32 %v645, %v666
    %v669 = vsel %vm77, 5, 2
    %vm670 = vcmp.gt.s32.totalorder %v74, %v669
    %v671 = vsel %vm670, %v668, %v577
    %673 = vrot.lane.b32.xlu0 %v662, 64
    %v674 = vpop.permute.xlu0 %673
    %v676 = vsel %vm670, %v674, %v582
    %s677 = scalar_lea.vmem [#allocation2], 48
    %v678 = vld [vmem:[%s677] sm:$0xff]
    %v679 = vunpack.c.l.bf16 %v678
    %v680 = vunpack.c.h.bf16 %v678
    %v681 = vpack.c.bf16 %v671, %v671
    %v683 = vsel %vm121, %v681, 0
    %685 = vmatprep.subr.bf16.mxu0 0
    %686 = vmatpush1.bf16.msra.mxu0 0
    %687 = vmatprep.subr.bf16.mxu0 0
    %688 = vmatpush1.bf16.msra.mxu0 0
    %689 = vmatprep.subr.bf16.mxu0 0
    %690 = vmatpush1.bf16.msra.mxu0 0
    %691 = vmatprep.subr.bf16.mxu0 0
    %692 = vmatpush1.bf16.msra.mxu0 0
    %693 = vmatprep.subr.bf16.mxu0 %v112
    %694 = vmatpush1.bf16.msra.mxu0 %v111
    %695 = vmatprep.subr.bf16.mxu0 %v110
    %696 = vmatpush1.bf16.msra.mxu0 %v109
    %697 = vmatprep.subr.bf16.mxu0 %v108
    %698 = vmatpush1.bf16.msra.mxu0 %v107
    %699 = vmatprep.subr.bf16.mxu0 %v106
    %700 = vmatpush1.bf16.msra.mxu0 %v105
    %701 = vmatprep.subr.bf16.mxu0 0
    %702 = vmatpush2.bf16.msra.mxu0 0
    %703 = vmatprep.subr.bf16.mxu0 0
    %704 = vmatpush2.bf16.msra.mxu0 0
    %705 = vmatprep.subr.bf16.mxu0 0
    %706 = vmatpush2.bf16.msra.mxu0 0
    %707 = vmatprep.subr.bf16.mxu0 0
    %708 = vmatpush2.bf16.msra.mxu0 0
    %709 = vmatprep.subr.bf16.mxu0 0
    %710 = vmatpush2.bf16.msra.mxu0 0
    %711 = vmatprep.subr.bf16.mxu0 0
    %712 = vmatpush2.bf16.msra.mxu0 0
    %713 = vmatprep.subr.bf16.mxu0 0
    %714 = vmatpush2.bf16.msra.mxu0 0
    %715 = vmatprep.subr.bf16.mxu0 0
    %716 = vmatpush2.bf16.msra.mxu0 0
    %717 = vmatprep.mubr.bf16.mxu0 0
    %718 = vmatmul.mubr.bf16.gmra.mxu0 %v683
    %v719 = vpop.f32.mrf.mxu0
    %v720 = vadd.f32 0.0, %v719
    %v721 = vpop.f32.mrf.mxu0
    %v722 = vadd.f32 0.0, %v721
    %v723 = vpop.f32.mrf.mxu0
    %v724 = vpop.f32.mrf.mxu0
    %725 = vdwg.mxu0
    %v726 = vadd.f32 %v679, %v720
    %v727 = vadd.f32 %v680, %v722
    %v728 = vxor.u32 %v726, 2147483648
    %v729 = vxor.u32 %v727, 2147483648
    %v730 = vmul.f32 %v728, 1.442695
    %v731 = vpow.pop %v730
    %v732 = vmul.f32 %v729, 1.442695
    %v733 = vpow.pop %v732
    %v734 = vadd.f32 %v731, 1.0
    %v735 = vadd.f32 %v733, 1.0
    %v736 = vrcp.pop %v734
    %v737 = vmul.f32 1.0, %v736
    %v738 = vrcp.pop %v735
    %v739 = vmul.f32 1.0, %v738
    %v740 = vmul.f32 %v739, 2.0
    %v741 = vsub.f32 %v740, 1.0
    %743 = vrot.lane.b32.xlu0 %v676, 64
    %v744 = vpop.permute.xlu0 %743
    %v746 = vmul.f32 %v737, %v744
    %748 = vrot.lane.b32.xlu0 %v741, 64
    %v749 = vpop.permute.xlu0 %748
    %v751 = vmul.f32 %v737, %v749
    %753 = vrot.lane.b32.xlu0 %v751, 64
    %v754 = vpop.permute.xlu0 %753
    %v756 = vadd.f32 %v746, %v754
    %v757 = vtanh.pop %v756
    %759 = vrot.lane.b32.xlu0 %v757, 64
    %v760 = vpop.permute.xlu0 %759
    %v762 = vmul.f32 %v739, %v760
    %v763 = vsel %vm77, 6, 1
    %vm764 = vcmp.gt.s32.totalorder %v74, %v763
    %v765 = vsel %vm764, %v762, %v671
    %767 = vrot.lane.b32.xlu0 %v756, 64
    %v768 = vpop.permute.xlu0 %767
    %v770 = vsel %vm764, %v768, %v676
    %s771 = scalar_lea.vmem [#allocation2], 56
    %v772 = vld [vmem:[%s771] sm:$0xff]
    %v773 = vunpack.c.l.bf16 %v772
    %v774 = vunpack.c.h.bf16 %v772
    %v775 = vpack.c.bf16 %v765, %v765
    %v777 = vsel %vm121, %v775, 0
    %779 = vmatprep.subr.bf16.mxu0 0
    %780 = vmatpush1.bf16.msra.mxu0 0
    %781 = vmatprep.subr.bf16.mxu0 0
    %782 = vmatpush1.bf16.msra.mxu0 0
    %783 = vmatprep.subr.bf16.mxu0 0
    %784 = vmatpush1.bf16.msra.mxu0 0
    %785 = vmatprep.subr.bf16.mxu0 0
    %786 = vmatpush1.bf16.msra.mxu0 0
    %787 = vmatprep.subr.bf16.mxu0 %v112
    %788 = vmatpush1.bf16.msra.mxu0 %v111
    %789 = vmatprep.subr.bf16.mxu0 %v110
    %790 = vmatpush1.bf16.msra.mxu0 %v109
    %791 = vmatprep.subr.bf16.mxu0 %v108
    %792 = vmatpush1.bf16.msra.mxu0 %v107
    %793 = vmatprep.subr.bf16.mxu0 %v106
    %794 = vmatpush1.bf16.msra.mxu0 %v105
    %795 = vmatprep.subr.bf16.mxu0 0
    %796 = vmatpush2.bf16.msra.mxu0 0
    %797 = vmatprep.subr.bf16.mxu0 0
    %798 = vmatpush2.bf16.msra.mxu0 0
    %799 = vmatprep.subr.bf16.mxu0 0
    %800 = vmatpush2.bf16.msra.mxu0 0
    %801 = vmatprep.subr.bf16.mxu0 0
    %802 = vmatpush2.bf16.msra.mxu0 0
    %803 = vmatprep.subr.bf16.mxu0 0
    %804 = vmatpush2.bf16.msra.mxu0 0
    %805 = vmatprep.subr.bf16.mxu0 0
    %806 = vmatpush2.bf16.msra.mxu0 0
    %807 = vmatprep.subr.bf16.mxu0 0
    %808 = vmatpush2.bf16.msra.mxu0 0
    %809 = vmatprep.subr.bf16.mxu0 0
    %810 = vmatpush2.bf16.msra.mxu0 0
    %811 = vmatprep.mubr.bf16.mxu0 0
    %812 = vmatmul.mubr.bf16.gmra.mxu0 %v777
    %v813 = vpop.f32.mrf.mxu0
    %v814 = vadd.f32 0.0, %v813
    %v815 = vpop.f32.mrf.mxu0
    %v816 = vadd.f32 0.0, %v815
    %v817 = vpop.f32.mrf.mxu0
    %v818 = vpop.f32.mrf.mxu0
    %819 = vdwg.mxu0
    %v820 = vadd.f32 %v773, %v814
    %v821 = vadd.f32 %v774, %v816
    %v822 = vxor.u32 %v820, 2147483648
    %v823 = vxor.u32 %v821, 2147483648
    %v824 = vmul.f32 %v822, 1.442695
    %v825 = vpow.pop %v824
    %v826 = vmul.f32 %v823, 1.442695
    %v827 = vpow.pop %v826
    %v828 = vadd.f32 %v825, 1.0
    %v829 = vadd.f32 %v827, 1.0
    %v830 = vrcp.pop %v828
    %v831 = vmul.f32 1.0, %v830
    %v832 = vrcp.pop %v829
    %v833 = vmul.f32 1.0, %v832
    %v834 = vmul.f32 %v833, 2.0
    %v835 = vsub.f32 %v834, 1.0
    %837 = vrot.lane.b32.xlu0 %v770, 64
    %v838 = vpop.permute.xlu0 %837
    %v840 = vmul.f32 %v831, %v838
    %842 = vrot.lane.b32.xlu0 %v835, 64
    %v843 = vpop.permute.xlu0 %842
    %v845 = vmul.f32 %v831, %v843
    %847 = vrot.lane.b32.xlu0 %v845, 64
    %v848 = vpop.permute.xlu0 %847
    %v850 = vadd.f32 %v840, %v848
    %v851 = vtanh.pop %v850
    %853 = vrot.lane.b32.xlu0 %v851, 64
    %v854 = vpop.permute.xlu0 %853
    %v856 = vmul.f32 %v833, %v854
    %v857 = vsel %vm77, 7, 0
    %vm858 = vcmp.gt.s32.totalorder %v74, %v857
    %v859 = vsel %vm858, %v856, %v765
    %v860 = vld [vmem:[#allocation7] sm:$0xff]
    %v861 = vld [vmem:[#allocation7 + $0x8] sm:$0xff]
    %v862 = vld [vmem:[#allocation7 + $0x10] sm:$0xff]
    %v863 = vld [vmem:[#allocation7 + $0x18] sm:$0xff]
    %v864 = vld [vmem:[#allocation7 + $0x20] sm:$0xff]
    %v865 = vld [vmem:[#allocation7 + $0x28] sm:$0xff]
    %v866 = vld [vmem:[#allocation7 + $0x30] sm:$0xff]
    %v867 = vld [vmem:[#allocation7 + $0x38] sm:$0xff]
    %v868 = vld [vmem:[%s4] sm:$0x1]
    %v870 = vlaneseq
    %v871 = vshrl.u32 %v870, 7
    %v872 = vsub.s32 0, %v871
    %v873 = vrot.slane %v868, %v872
    %v876 = vsel %vm121, %v859, 0
    %878 = vmatprep.subr.mxu0 0.0
    %879 = vmatpush1.msra.mxu0 0.0
    %880 = vmatprep.subr.mxu0 0.0
    %881 = vmatpush1.msra.mxu0 0.0
    %882 = vmatprep.subr.mxu0 0.0
    %883 = vmatpush1.msra.mxu0 0.0
    %884 = vmatprep.subr.mxu0 0.0
    %885 = vmatpush1.msra.mxu0 0.0
    %886 = vmatprep.subr.mxu0 0.0
    %887 = vmatpush1.msra.mxu0 0.0
    %888 = vmatprep.subr.mxu0 0.0
    %889 = vmatpush1.msra.mxu0 0.0
    %890 = vmatprep.subr.mxu0 0.0
    %891 = vmatpush1.msra.mxu0 0.0
    %892 = vmatprep.subr.mxu0 0.0
    %893 = vmatpush1.msra.mxu0 0.0
    %894 = vmatprep.subr.mxu0 0.0
    %895 = vmatpush1.msra.mxu0 %v867
    %896 = vmatprep.subr.mxu0 0.0
    %897 = vmatpush1.msra.mxu0 %v866
    %898 = vmatprep.subr.mxu0 0.0
    %899 = vmatpush1.msra.mxu0 %v865
    %900 = vmatprep.subr.mxu0 0.0
    %901 = vmatpush1.msra.mxu0 %v864
    %902 = vmatprep.subr.mxu0 0.0
    %903 = vmatpush1.msra.mxu0 %v863
    %904 = vmatprep.subr.mxu0 0.0
    %905 = vmatpush1.msra.mxu0 %v862
    %906 = vmatprep.subr.mxu0 0.0
    %907 = vmatpush1.msra.mxu0 %v861
    %908 = vmatprep.subr.mxu0 0.0
    %909 = vmatpush1.msra.mxu0 %v860
    %910 = vmatprep.subr.mxu0 0.0
    %911 = vmatpush2.msra.mxu0 0.0
    %912 = vmatprep.subr.mxu0 0.0
    %913 = vmatpush2.msra.mxu0 0.0
    %914 = vmatprep.subr.mxu0 0.0
    %915 = vmatpush2.msra.mxu0 0.0
    %916 = vmatprep.subr.mxu0 0.0
    %917 = vmatpush2.msra.mxu0 0.0
    %918 = vmatprep.subr.mxu0 0.0
    %919 = vmatpush2.msra.mxu0 0.0
    %920 = vmatprep.subr.mxu0 0.0
    %921 = vmatpush2.msra.mxu0 0.0
    %922 = vmatprep.subr.mxu0 0.0
    %923 = vmatpush2.msra.mxu0 0.0
    %924 = vmatprep.subr.mxu0 0.0
    %925 = vmatpush2.msra.mxu0 0.0
    %926 = vmatprep.subr.mxu0 0.0
    %927 = vmatpush2.msra.mxu0 0.0
    %928 = vmatprep.subr.mxu0 0.0
    %929 = vmatpush2.msra.mxu0 0.0
    %930 = vmatprep.subr.mxu0 0.0
    %931 = vmatpush2.msra.mxu0 0.0
    %932 = vmatprep.subr.mxu0 0.0
    %933 = vmatpush2.msra.mxu0 0.0
    %934 = vmatprep.subr.mxu0 0.0
    %935 = vmatpush2.msra.mxu0 0.0
    %936 = vmatprep.subr.mxu0 0.0
    %937 = vmatpush2.msra.mxu0 0.0
    %938 = vmatprep.subr.mxu0 0.0
    %939 = vmatpush2.msra.mxu0 0.0
    %940 = vmatprep.subr.mxu0 0.0
    %941 = vmatpush2.msra.mxu0 0.0
    %942 = vmatprep.mubr.f32.mxu0 0.0
    %943 = vmatmul.mubr.f32.gmra.mxu0 %v876
    %v944 = vpop.f32.mrf.mxu0
    %v945 = vadd.f32 %v873, %v944
    %v946 = vpop.f32.mrf.mxu0
    %947 = vdwg.mxu0
    %948 = vst [vmem:[#allocation8] sm:$0xff] %v945
    // Predicated region
    $region34: #{tpu_custom_call.1} parent=1 // pred_check
      _
    $region35: #{tpu_custom_call.1} parent=1 // pred_check_branch
      %950 = sbr.rel (0) target = $region37
    $region36: #{tpu_custom_call.1} parent=1 // pred_region
      %s952 = ssub.s32 128, 128
      %953 = vsyncadd [#allocation4], %s952
      %s955 = sshll.u32 [#allocation8], 4
      %s956 = int_to_ptr.vmem [resolvable:$true] %s955
      %958 = dma.vmem_to_hbm [thread:$0]  %s956, 128, %s5, [#allocation4]
    $region37: #{tpu_custom_call.1} parent=1 // pred_fallthru
      _
    // Predicated region
    $region38: #{tpu_custom_call.1} parent=1 // pred_check
      _
    $region39: #{tpu_custom_call.1} parent=1 // pred_check_branch
      %960 = sbr.rel (0) target = $region41
    $region40: #{tpu_custom_call.1} parent=1 // pred_region
      %961 = dma.done [#allocation4], 128
    $region41: #{tpu_custom_call.1} parent=1 // pred_fallthru
      _
    %962 = vsyncpa [#allocation3], 1
    %963 = vsyncpa [#allocation6], 1
    %964 = vsyncpa [#allocation4], 1

</llo_original>
